<compile_context>
chip_gen: v5e
topology: v5e:2x2
jax: 0.10.0
libtpu: 0.0.40
codegen_flags: <defaults>
</compile_context>

<pallas_src>
from functools import partial
from typing import List

import numpy as np

import jax
import jax.numpy as jnp
from jax.experimental import pallas as pl
from jax.experimental.pallas import tpu as pltpu

_MAX_BYTES = 128            # max label length in UTF-8 bytes
_LP = _MAX_BYTES // 4       # packed int32 words per label
_LANE = 128                 # TPU lane width
_ROW_PAD = 8                # sublane multiple
_TQ_MAX = 128               # max query rows per grid step
_TN_MAX = 2048              # max vocab columns per grid block (256 KiB VMEM)
_CHUNK = 128                # inner vocab-column chunk (keeps live set in vregs)
_OUT_LANES = 128            # lane-dense output width (unmasked vst)


def _round_up(x: int, m: int) -> int:
    return ((x + m - 1) // m) * m


def _encode_strings(names: List[str]) -> np.ndarray:
    """UTF-8 encode labels to (len(names), _LP) int32, 4 bytes packed per word."""
    raw = np.zeros((len(names), _MAX_BYTES), dtype=np.uint8)
    for i, s in enumerate(names):
        b = s.encode("utf-8")[:_MAX_BYTES]
        # TODO(synk): labels longer than 128 UTF-8 bytes are truncated; two long
        # labels sharing a 128-byte prefix would alias (a Python dict would not).
        raw[i, : len(b)] = np.frombuffer(b, dtype=np.uint8)
    r = raw.reshape(len(names), _LP, 4).astype(np.int64)
    packed = r[..., 0] | (r[..., 1] << 8) | (r[..., 2] << 16) | (r[..., 3] << 24)
    return packed.astype(np.uint32).view(np.int32)


def _label_lookup_kernel(q_ref, v_ref, out_ref, *, n_valid: int, chunk: int):
    """One (query tile) x (vocab block) step.

    q_ref  : (TQ, 32)  int32  query rows
    v_ref  : (32, TN)  int32  vocab columns (lane-dense, transposed)
    out_ref: (TQ, 128) int32  running max of matching vocab indices (resident
             across the vocab grid axis).
    """
    ni = pl.program_id(1)

    @pl.when(ni == 0)
    def _():
        out_ref[...] = jnp.full(out_ref.shape, -1, dtype=out_ref.dtype)

    q = q_ref[...]                       # (TQ, LP) int32, small, loaded once
    tq, lp = q.shape
    _, tn = v_ref.shape
    base = ni * tn

    best = jnp.full((tq, 1), -1, dtype=jnp.int32)

    # Inner chunking over the vocab block: each chunk's live working set is a
    # (TQ, 128) mask + one (TQ, 128) compare temp -- no (TQ, TN, LP) tensor.
    for c in range(tn // chunk):
        col0 = c * chunk
        v = v_ref[:, col0:col0 + chunk]                      # (LP, chunk)

        # Unrolled word loop: match iff all 32 packed words agree.
        match = q[:, 0:1] == v[0:1, :]                       # (TQ, chunk) bool
        for k in range(1, lp):
            match &= q[:, k:k + 1] == v[k:k + 1, :]

        col_idx = base + col0 + jax.lax.broadcasted_iota(
            jnp.int32, (tq, chunk), 1)                       # (TQ, chunk)
        match &= col_idx < n_valid                           # mask out padding

        cand = jnp.where(match, col_idx, -1)
        best = jnp.maximum(best, jnp.max(cand, axis=-1, keepdims=True))

    # Running max across vocab blocks; (TQ, 1) broadcast over the lane-dense
    # resident output block.
    out_ref[...] = jnp.maximum(out_ref[...], best)


@partial(jax.jit, static_argnums=(2, 3, 4, 5))
def _lookup(queries, vocab_t, tq: int, tn: int, chunk: int, n_valid: int):
    b_pad, lp = queries.shape
    n_pad = vocab_t.shape[1]
    grid = (b_pad // tq, n_pad // tn)
    kernel = partial(_label_lookup_kernel, n_valid=n_valid, chunk=chunk)
    return pl.pallas_call(
        kernel,
        out_shape=jax.ShapeDtypeStruct((b_pad, _OUT_LANES), jnp.int32),
        grid=grid,
        in_specs=[
            pl.BlockSpec((tq, lp), lambda qi, ni: (qi, 0)),   # query tile
            pl.BlockSpec((lp, tn), lambda qi, ni: (0, ni)),   # vocab block
        ],
        out_specs=pl.BlockSpec((tq, _OUT_LANES), lambda qi, ni: (qi, 0)),
        compiler_params=pltpu.CompilerParams(
            dimension_semantics=("parallel", "arbitrary"),
            vmem_limit_bytes=32 * 1024 * 1024,
        ),
    )(queries, vocab_t)


def _pick_tq(batch: int) -> int:
    """Query tile size: as large as possible, but keep >= 2 query tiles when
    the batch allows (the parallel query axis shards across v7x's 2 cores)."""
    b8 = _round_up(max(batch, 1), _ROW_PAD)
    tq = min(_TQ_MAX, b8)
    if b8 // tq < 2 and b8 >= 2 * _ROW_PAD:
        tq = _round_up(b8 // 2, _ROW_PAD)
    return tq


class LabelTransform:
    """JAX/Pallas equivalent of the PyTorch LabelTransform module."""

    def __init__(self, label_names: List[str]):
        label_names = list(label_names) if label_names is not None else []
        self.id_to_name = list(label_names)
        # Duplicate names: last index wins -- same as the PyTorch dict; the
        # in-kernel max over matching columns reproduces that.
        self.name_to_idx = {n: i for i, n in enumerate(label_names)}

        n = len(label_names)
        self._n_valid = n
        n_lane = _round_up(max(n, 1), _LANE)        # lane-dense column count
        self._tn = min(_TN_MAX, n_lane)
        n_pad = _round_up(n_lane, self._tn)

        vocab_t = np.full((_LP, n_pad), -1, dtype=np.int32)
        if n:
            vocab_t[:, :n] = _encode_strings(label_names).T
        self._vocab_t = jnp.asarray(vocab_t)

    # forward == encode
    def __call__(self, label_name: str) -> int:
        return self.encode(label_name)

    def encode(self, label_name: str) -> int:
        return self.encode_batch([label_name])[0]

    def encode_batch(self, label_names: List[str]) -> List[int]:
        """Batched lookup: one kernel launch, one host sync for all queries."""
        if not label_names:
            return []
        q = _encode_strings(label_names)
        b = q.shape[0]
        tq = _pick_tq(b)
        b_pad = _round_up(_round_up(b, _ROW_PAD), tq)
        if b_pad != b:
            pad = np.full((b_pad - b, _LP), -2, dtype=np.int32)  # never matches
            q = np.concatenate([q, pad], axis=0)
        out = _lookup(jnp.asarray(q), self._vocab_t, tq, self._tn,
                      _CHUNK, self._n_valid)
        out = jax.block_until_ready(out)
        # Results are lane-broadcast on device; read back column 0 only
        # (B ints, not B*128).  Unknown labels return -1 (dict would KeyError).
        # TODO(synk): the original raises KeyError for unknown labels; a device
        # kernel cannot raise, so -1 is the sentinel.
        return [int(x) for x in np.asarray(out[:b, 0])]

    def decode(self, label_idx: int) -> str:
        return self.id_to_name[label_idx]


if __name__ == "__main__":
    # No learned parameters in the original module; PRNGKey(0) only shuffles
    # the query order.  Includes a non-ASCII label to exercise UTF-8 packing.
    label_names = ["negative", "neutral", "positive", "spam", "toxic", "café"]
    transform = LabelTransform(label_names)

    key = jax.random.PRNGKey(0)
    order = jax.random.permutation(key, len(label_names))
    shuffled = [label_names[int(i)] for i in order]

    ok = True

    # Batched path: one kernel launch for all queries.
    got_batch = transform.encode_batch(shuffled)
    for name, got in zip(shuffled, got_batch):
        if got != transform.name_to_idx[name]:
            ok = False
        if transform.decode(got) != name:
            ok = False

    # Single-query path (pads to one query tile).
    if transform("positive") != transform.name_to_idx["positive"]:
        ok = False

    # Unknown label -> -1 sentinel (dict would KeyError).
    if transform.encode("not_a_label") != -1:
        ok = False

    if ok:
        print("KERNEL_OK")
</pallas_src>

<mosaic_0001>
module attributes {stable_mosaic.version = 11 : i64} {
  func.func @_label_lookup_kernel(%arg0: i32, %arg1: i32, %arg2: memref<8x32xi32, #tpu.memory_space<vmem>>, %arg3: memref<32x128xi32, #tpu.memory_space<vmem>>, %arg4: memref<8x128xi32, #tpu.memory_space<vmem>>) attributes {dimension_semantics = [#tpu.dimension_semantics<parallel>, #tpu.dimension_semantics<arbitrary>], iteration_bounds = array<i64: 1, 1>, scalar_prefetch = 0 : i64, scratch_operands = 0 : i64, tpu.core_type = #tpu.core_type<tc>, window_params = [{transform_indices = @transform_0, window_bounds = array<i64: 8, 32>}, {transform_indices = @transform_1, window_bounds = array<i64: 32, 128>}, {transform_indices = @transform_2, window_bounds = array<i64: 8, 128>}]} {
    %c0_i32 = arith.constant 0 : i32
    %0 = arith.cmpi eq, %arg1, %c0_i32 : i32
    %1 = arith.extui %0 : i1 to i32
    %c0_i32_0 = arith.constant 0 : i32
    %2 = arith.cmpi ne, %1, %c0_i32_0 : i32
    scf.if %2 {
      %c-1_i32_10 = arith.constant -1 : i32
      %214 = vector.broadcast %c-1_i32_10 : i32 to vector<8x128xi32>
      %c0_11 = arith.constant 0 : index
      %c0_12 = arith.constant 0 : index
      %215 = vector.load %arg4[%c0_11, %c0_12] : memref<8x128xi32, #tpu.memory_space<vmem>>, vector<8x128xi32>
      tpu.vector_store %arg4[%c0_11, %c0_12], %214 {strides = array<i32>} : memref<8x128xi32, #tpu.memory_space<vmem>>, vector<8x128xi32>,
    } else {
    }
    %c0 = arith.constant 0 : index
    %c0_1 = arith.constant 0 : index
    %3 = vector.load %arg2[%c0, %c0_1] : memref<8x32xi32, #tpu.memory_space<vmem>>, vector<8x32xi32>
    %c128_i32 = arith.constant 128 : i32
    %4 = arith.muli %arg1, %c128_i32 : i32
    %c-1_i32 = arith.constant -1 : i32
    %5 = vector.broadcast %c-1_i32 : i32 to vector<8x1xi32>
    %c0_2 = arith.constant 0 : index
    %c0_3 = arith.constant 0 : index
    %6 = vector.load %arg3[%c0_2, %c0_3] : memref<32x128xi32, #tpu.memory_space<vmem>>, vector<32x128xi32>
    %7 = vector.extract_strided_slice %3 {offsets = [0, 0], sizes = [8, 1], strides = [1, 1]} : vector<8x32xi32> to vector<8x1xi32>
    %8 = vector.extract_strided_slice %6 {offsets = [0, 0], sizes = [1, 128], strides = [1, 1]} : vector<32x128xi32> to vector<1x128xi32>
    %9 = vector.broadcast %7 : vector<8x1xi32> to vector<8x128xi32>
    %10 = vector.broadcast %8 : vector<1x128xi32> to vector<8x128xi32>
    %11 = arith.cmpi eq, %9, %10 : vector<8x128xi32>
    %12 = vector.extract_strided_slice %3 {offsets = [0, 1], sizes = [8, 1], strides = [1, 1]} : vector<8x32xi32> to vector<8x1xi32>
    %13 = vector.extract_strided_slice %6 {offsets = [1, 0], sizes = [1, 128], strides = [1, 1]} : vector<32x128xi32> to vector<1x128xi32>
    %14 = vector.broadcast %12 : vector<8x1xi32> to vector<8x128xi32>
    %15 = vector.broadcast %13 : vector<1x128xi32> to vector<8x128xi32>
    %16 = arith.cmpi eq, %14, %15 : vector<8x128xi32>
    %17 = arith.andi %11, %16 : vector<8x128xi1>
    %18 = vector.extract_strided_slice %3 {offsets = [0, 2], sizes = [8, 1], strides = [1, 1]} : vector<8x32xi32> to vector<8x1xi32>
    %19 = vector.extract_strided_slice %6 {offsets = [2, 0], sizes = [1, 128], strides = [1, 1]} : vector<32x128xi32> to vector<1x128xi32>
    %20 = vector.broadcast %18 : vector<8x1xi32> to vector<8x128xi32>
    %21 = vector.broadcast %19 : vector<1x128xi32> to vector<8x128xi32>
    %22 = arith.cmpi eq, %20, %21 : vector<8x128xi32>
    %23 = arith.andi %17, %22 : vector<8x128xi1>
    %24 = vector.extract_strided_slice %3 {offsets = [0, 3], sizes = [8, 1], strides = [1, 1]} : vector<8x32xi32> to vector<8x1xi32>
    %25 = vector.extract_strided_slice %6 {offsets = [3, 0], sizes = [1, 128], strides = [1, 1]} : vector<32x128xi32> to vector<1x128xi32>
    %26 = vector.broadcast %24 : vector<8x1xi32> to vector<8x128xi32>
    %27 = vector.broadcast %25 : vector<1x128xi32> to vector<8x128xi32>
    %28 = arith.cmpi eq, %26, %27 : vector<8x128xi32>
    %29 = arith.andi %23, %28 : vector<8x128xi1>
    %30 = vector.extract_strided_slice %3 {offsets = [0, 4], sizes = [8, 1], strides = [1, 1]} : vector<8x32xi32> to vector<8x1xi32>
    %31 = vector.extract_strided_slice %6 {offsets = [4, 0], sizes = [1, 128], strides = [1, 1]} : vector<32x128xi32> to vector<1x128xi32>
    %32 = vector.broadcast %30 : vector<8x1xi32> to vector<8x128xi32>
    %33 = vector.broadcast %31 : vector<1x128xi32> to vector<8x128xi32>
    %34 = arith.cmpi eq, %32, %33 : vector<8x128xi32>
    %35 = arith.andi %29, %34 : vector<8x128xi1>
    %36 = vector.extract_strided_slice %3 {offsets = [0, 5], sizes = [8, 1], strides = [1, 1]} : vector<8x32xi32> to vector<8x1xi32>
    %37 = vector.extract_strided_slice %6 {offsets = [5, 0], sizes = [1, 128], strides = [1, 1]} : vector<32x128xi32> to vector<1x128xi32>
    %38 = vector.broadcast %36 : vector<8x1xi32> to vector<8x128xi32>
    %39 = vector.broadcast %37 : vector<1x128xi32> to vector<8x128xi32>
    %40 = arith.cmpi eq, %38, %39 : vector<8x128xi32>
    %41 = arith.andi %35, %40 : vector<8x128xi1>
    %42 = vector.extract_strided_slice %3 {offsets = [0, 6], sizes = [8, 1], strides = [1, 1]} : vector<8x32xi32> to vector<8x1xi32>
    %43 = vector.extract_strided_slice %6 {offsets = [6, 0], sizes = [1, 128], strides = [1, 1]} : vector<32x128xi32> to vector<1x128xi32>
    %44 = vector.broadcast %42 : vector<8x1xi32> to vector<8x128xi32>
    %45 = vector.broadcast %43 : vector<1x128xi32> to vector<8x128xi32>
    %46 = arith.cmpi eq, %44, %45 : vector<8x128xi32>
    %47 = arith.andi %41, %46 : vector<8x128xi1>
    %48 = vector.extract_strided_slice %3 {offsets = [0, 7], sizes = [8, 1], strides = [1, 1]} : vector<8x32xi32> to vector<8x1xi32>
    %49 = vector.extract_strided_slice %6 {offsets = [7, 0], sizes = [1, 128], strides = [1, 1]} : vector<32x128xi32> to vector<1x128xi32>
    %50 = vector.broadcast %48 : vector<8x1xi32> to vector<8x128xi32>
    %51 = vector.broadcast %49 : vector<1x128xi32> to vector<8x128xi32>
    %52 = arith.cmpi eq, %50, %51 : vector<8x128xi32>
    %53 = arith.andi %47, %52 : vector<8x128xi1>
    %54 = vector.extract_strided_slice %3 {offsets = [0, 8], sizes = [8, 1], strides = [1, 1]} : vector<8x32xi32> to vector<8x1xi32>
    %55 = vector.extract_strided_slice %6 {offsets = [8, 0], sizes = [1, 128], strides = [1, 1]} : vector<32x128xi32> to vector<1x128xi32>
    %56 = vector.broadcast %54 : vector<8x1xi32> to vector<8x128xi32>
    %57 = vector.broadcast %55 : vector<1x128xi32> to vector<8x128xi32>
    %58 = arith.cmpi eq, %56, %57 : vector<8x128xi32>
    %59 = arith.andi %53, %58 : vector<8x128xi1>
    %60 = vector.extract_strided_slice %3 {offsets = [0, 9], sizes = [8, 1], strides = [1, 1]} : vector<8x32xi32> to vector<8x1xi32>
    %61 = vector.extract_strided_slice %6 {offsets = [9, 0], sizes = [1, 128], strides = [1, 1]} : vector<32x128xi32> to vector<1x128xi32>
    %62 = vector.broadcast %60 : vector<8x1xi32> to vector<8x128xi32>
    %63 = vector.broadcast %61 : vector<1x128xi32> to vector<8x128xi32>
    %64 = arith.cmpi eq, %62, %63 : vector<8x128xi32>
    %65 = arith.andi %59, %64 : vector<8x128xi1>
    %66 = vector.extract_strided_slice %3 {offsets = [0, 10], sizes = [8, 1], strides = [1, 1]} : vector<8x32xi32> to vector<8x1xi32>
    %67 = vector.extract_strided_slice %6 {offsets = [10, 0], sizes = [1, 128], strides = [1, 1]} : vector<32x128xi32> to vector<1x128xi32>
    %68 = vector.broadcast %66 : vector<8x1xi32> to vector<8x128xi32>
    %69 = vector.broadcast %67 : vector<1x128xi32> to vector<8x128xi32>
    %70 = arith.cmpi eq, %68, %69 : vector<8x128xi32>
    %71 = arith.andi %65, %70 : vector<8x128xi1>
    %72 = vector.extract_strided_slice %3 {offsets = [0, 11], sizes = [8, 1], strides = [1, 1]} : vector<8x32xi32> to vector<8x1xi32>
    %73 = vector.extract_strided_slice %6 {offsets = [11, 0], sizes = [1, 128], strides = [1, 1]} : vector<32x128xi32> to vector<1x128xi32>
    %74 = vector.broadcast %72 : vector<8x1xi32> to vector<8x128xi32>
    %75 = vector.broadcast %73 : vector<1x128xi32> to vector<8x128xi32>
    %76 = arith.cmpi eq, %74, %75 : vector<8x128xi32>
    %77 = arith.andi %71, %76 : vector<8x128xi1>
    %78 = vector.extract_strided_slice %3 {offsets = [0, 12], sizes = [8, 1], strides = [1, 1]} : vector<8x32xi32> to vector<8x1xi32>
    %79 = vector.extract_strided_slice %6 {offsets = [12, 0], sizes = [1, 128], strides = [1, 1]} : vector<32x128xi32> to vector<1x128xi32>
    %80 = vector.broadcast %78 : vector<8x1xi32> to vector<8x128xi32>
    %81 = vector.broadcast %79 : vector<1x128xi32> to vector<8x128xi32>
    %82 = arith.cmpi eq, %80, %81 : vector<8x128xi32>
    %83 = arith.andi %77, %82 : vector<8x128xi1>
    %84 = vector.extract_strided_slice %3 {offsets = [0, 13], sizes = [8, 1], strides = [1, 1]} : vector<8x32xi32> to vector<8x1xi32>
    %85 = vector.extract_strided_slice %6 {offsets = [13, 0], sizes = [1, 128], strides = [1, 1]} : vector<32x128xi32> to vector<1x128xi32>
    %86 = vector.broadcast %84 : vector<8x1xi32> to vector<8x128xi32>
    %87 = vector.broadcast %85 : vector<1x128xi32> to vector<8x128xi32>
    %88 = arith.cmpi eq, %86, %87 : vector<8x128xi32>
    %89 = arith.andi %83, %88 : vector<8x128xi1>
    %90 = vector.extract_strided_slice %3 {offsets = [0, 14], sizes = [8, 1], strides = [1, 1]} : vector<8x32xi32> to vector<8x1xi32>
    %91 = vector.extract_strided_slice %6 {offsets = [14, 0], sizes = [1, 128], strides = [1, 1]} : vector<32x128xi32> to vector<1x128xi32>
    %92 = vector.broadcast %90 : vector<8x1xi32> to vector<8x128xi32>
    %93 = vector.broadcast %91 : vector<1x128xi32> to vector<8x128xi32>
    %94 = arith.cmpi eq, %92, %93 : vector<8x128xi32>
    %95 = arith.andi %89, %94 : vector<8x128xi1>
    %96 = vector.extract_strided_slice %3 {offsets = [0, 15], sizes = [8, 1], strides = [1, 1]} : vector<8x32xi32> to vector<8x1xi32>
    %97 = vector.extract_strided_slice %6 {offsets = [15, 0], sizes = [1, 128], strides = [1, 1]} : vector<32x128xi32> to vector<1x128xi32>
    %98 = vector.broadcast %96 : vector<8x1xi32> to vector<8x128xi32>
    %99 = vector.broadcast %97 : vector<1x128xi32> to vector<8x128xi32>
    %100 = arith.cmpi eq, %98, %99 : vector<8x128xi32>
    %101 = arith.andi %95, %100 : vector<8x128xi1>
    %102 = vector.extract_strided_slice %3 {offsets = [0, 16], sizes = [8, 1], strides = [1, 1]} : vector<8x32xi32> to vector<8x1xi32>
    %103 = vector.extract_strided_slice %6 {offsets = [16, 0], sizes = [1, 128], strides = [1, 1]} : vector<32x128xi32> to vector<1x128xi32>
    %104 = vector.broadcast %102 : vector<8x1xi32> to vector<8x128xi32>
    %105 = vector.broadcast %103 : vector<1x128xi32> to vector<8x128xi32>
    %106 = arith.cmpi eq, %104, %105 : vector<8x128xi32>
    %107 = arith.andi %101, %106 : vector<8x128xi1>
    %108 = vector.extract_strided_slice %3 {offsets = [0, 17], sizes = [8, 1], strides = [1, 1]} : vector<8x32xi32> to vector<8x1xi32>
    %109 = vector.extract_strided_slice %6 {offsets = [17, 0], sizes = [1, 128], strides = [1, 1]} : vector<32x128xi32> to vector<1x128xi32>
    %110 = vector.broadcast %108 : vector<8x1xi32> to vector<8x128xi32>
    %111 = vector.broadcast %109 : vector<1x128xi32> to vector<8x128xi32>
    %112 = arith.cmpi eq, %110, %111 : vector<8x128xi32>
    %113 = arith.andi %107, %112 : vector<8x128xi1>
    %114 = vector.extract_strided_slice %3 {offsets = [0, 18], sizes = [8, 1], strides = [1, 1]} : vector<8x32xi32> to vector<8x1xi32>
    %115 = vector.extract_strided_slice %6 {offsets = [18, 0], sizes = [1, 128], strides = [1, 1]} : vector<32x128xi32> to vector<1x128xi32>
    %116 = vector.broadcast %114 : vector<8x1xi32> to vector<8x128xi32>
    %117 = vector.broadcast %115 : vector<1x128xi32> to vector<8x128xi32>
    %118 = arith.cmpi eq, %116, %117 : vector<8x128xi32>
    %119 = arith.andi %113, %118 : vector<8x128xi1>
    %120 = vector.extract_strided_slice %3 {offsets = [0, 19], sizes = [8, 1], strides = [1, 1]} : vector<8x32xi32> to vector<8x1xi32>
    %121 = vector.extract_strided_slice %6 {offsets = [19, 0], sizes = [1, 128], strides = [1, 1]} : vector<32x128xi32> to vector<1x128xi32>
    %122 = vector.broadcast %120 : vector<8x1xi32> to vector<8x128xi32>
    %123 = vector.broadcast %121 : vector<1x128xi32> to vector<8x128xi32>
    %124 = arith.cmpi eq, %122, %123 : vector<8x128xi32>
    %125 = arith.andi %119, %124 : vector<8x128xi1>
    %126 = vector.extract_strided_slice %3 {offsets = [0, 20], sizes = [8, 1], strides = [1, 1]} : vector<8x32xi32> to vector<8x1xi32>
    %127 = vector.extract_strided_slice %6 {offsets = [20, 0], sizes = [1, 128], strides = [1, 1]} : vector<32x128xi32> to vector<1x128xi32>
    %128 = vector.broadcast %126 : vector<8x1xi32> to vector<8x128xi32>
    %129 = vector.broadcast %127 : vector<1x128xi32> to vector<8x128xi32>
    %130 = arith.cmpi eq, %128, %129 : vector<8x128xi32>
    %131 = arith.andi %125, %130 : vector<8x128xi1>
    %132 = vector.extract_strided_slice %3 {offsets = [0, 21], sizes = [8, 1], strides = [1, 1]} : vector<8x32xi32> to vector<8x1xi32>
    %133 = vector.extract_strided_slice %6 {offsets = [21, 0], sizes = [1, 128], strides = [1, 1]} : vector<32x128xi32> to vector<1x128xi32>
    %134 = vector.broadcast %132 : vector<8x1xi32> to vector<8x128xi32>
    %135 = vector.broadcast %133 : vector<1x128xi32> to vector<8x128xi32>
    %136 = arith.cmpi eq, %134, %135 : vector<8x128xi32>
    %137 = arith.andi %131, %136 : vector<8x128xi1>
    %138 = vector.extract_strided_slice %3 {offsets = [0, 22], sizes = [8, 1], strides = [1, 1]} : vector<8x32xi32> to vector<8x1xi32>
    %139 = vector.extract_strided_slice %6 {offsets = [22, 0], sizes = [1, 128], strides = [1, 1]} : vector<32x128xi32> to vector<1x128xi32>
    %140 = vector.broadcast %138 : vector<8x1xi32> to vector<8x128xi32>
    %141 = vector.broadcast %139 : vector<1x128xi32> to vector<8x128xi32>
    %142 = arith.cmpi eq, %140, %141 : vector<8x128xi32>
    %143 = arith.andi %137, %142 : vector<8x128xi1>
    %144 = vector.extract_strided_slice %3 {offsets = [0, 23], sizes = [8, 1], strides = [1, 1]} : vector<8x32xi32> to vector<8x1xi32>
    %145 = vector.extract_strided_slice %6 {offsets = [23, 0], sizes = [1, 128], strides = [1, 1]} : vector<32x128xi32> to vector<1x128xi32>
    %146 = vector.broadcast %144 : vector<8x1xi32> to vector<8x128xi32>
    %147 = vector.broadcast %145 : vector<1x128xi32> to vector<8x128xi32>
    %148 = arith.cmpi eq, %146, %147 : vector<8x128xi32>
    %149 = arith.andi %143, %148 : vector<8x128xi1>
    %150 = vector.extract_strided_slice %3 {offsets = [0, 24], sizes = [8, 1], strides = [1, 1]} : vector<8x32xi32> to vector<8x1xi32>
    %151 = vector.extract_strided_slice %6 {offsets = [24, 0], sizes = [1, 128], strides = [1, 1]} : vector<32x128xi32> to vector<1x128xi32>
    %152 = vector.broadcast %150 : vector<8x1xi32> to vector<8x128xi32>
    %153 = vector.broadcast %151 : vector<1x128xi32> to vector<8x128xi32>
    %154 = arith.cmpi eq, %152, %153 : vector<8x128xi32>
    %155 = arith.andi %149, %154 : vector<8x128xi1>
    %156 = vector.extract_strided_slice %3 {offsets = [0, 25], sizes = [8, 1], strides = [1, 1]} : vector<8x32xi32> to vector<8x1xi32>
    %157 = vector.extract_strided_slice %6 {offsets = [25, 0], sizes = [1, 128], strides = [1, 1]} : vector<32x128xi32> to vector<1x128xi32>
    %158 = vector.broadcast %156 : vector<8x1xi32> to vector<8x128xi32>
    %159 = vector.broadcast %157 : vector<1x128xi32> to vector<8x128xi32>
    %160 = arith.cmpi eq, %158, %159 : vector<8x128xi32>
    %161 = arith.andi %155, %160 : vector<8x128xi1>
    %162 = vector.extract_strided_slice %3 {offsets = [0, 26], sizes = [8, 1], strides = [1, 1]} : vector<8x32xi32> to vector<8x1xi32>
    %163 = vector.extract_strided_slice %6 {offsets = [26, 0], sizes = [1, 128], strides = [1, 1]} : vector<32x128xi32> to vector<1x128xi32>
    %164 = vector.broadcast %162 : vector<8x1xi32> to vector<8x128xi32>
    %165 = vector.broadcast %163 : vector<1x128xi32> to vector<8x128xi32>
    %166 = arith.cmpi eq, %164, %165 : vector<8x128xi32>
    %167 = arith.andi %161, %166 : vector<8x128xi1>
    %168 = vector.extract_strided_slice %3 {offsets = [0, 27], sizes = [8, 1], strides = [1, 1]} : vector<8x32xi32> to vector<8x1xi32>
    %169 = vector.extract_strided_slice %6 {offsets = [27, 0], sizes = [1, 128], strides = [1, 1]} : vector<32x128xi32> to vector<1x128xi32>
    %170 = vector.broadcast %168 : vector<8x1xi32> to vector<8x128xi32>
    %171 = vector.broadcast %169 : vector<1x128xi32> to vector<8x128xi32>
    %172 = arith.cmpi eq, %170, %171 : vector<8x128xi32>
    %173 = arith.andi %167, %172 : vector<8x128xi1>
    %174 = vector.extract_strided_slice %3 {offsets = [0, 28], sizes = [8, 1], strides = [1, 1]} : vector<8x32xi32> to vector<8x1xi32>
    %175 = vector.extract_strided_slice %6 {offsets = [28, 0], sizes = [1, 128], strides = [1, 1]} : vector<32x128xi32> to vector<1x128xi32>
    %176 = vector.broadcast %174 : vector<8x1xi32> to vector<8x128xi32>
    %177 = vector.broadcast %175 : vector<1x128xi32> to vector<8x128xi32>
    %178 = arith.cmpi eq, %176, %177 : vector<8x128xi32>
    %179 = arith.andi %173, %178 : vector<8x128xi1>
    %180 = vector.extract_strided_slice %3 {offsets = [0, 29], sizes = [8, 1], strides = [1, 1]} : vector<8x32xi32> to vector<8x1xi32>
    %181 = vector.extract_strided_slice %6 {offsets = [29, 0], sizes = [1, 128], strides = [1, 1]} : vector<32x128xi32> to vector<1x128xi32>
    %182 = vector.broadcast %180 : vector<8x1xi32> to vector<8x128xi32>
    %183 = vector.broadcast %181 : vector<1x128xi32> to vector<8x128xi32>
    %184 = arith.cmpi eq, %182, %183 : vector<8x128xi32>
    %185 = arith.andi %179, %184 : vector<8x128xi1>
    %186 = vector.extract_strided_slice %3 {offsets = [0, 30], sizes = [8, 1], strides = [1, 1]} : vector<8x32xi32> to vector<8x1xi32>
    %187 = vector.extract_strided_slice %6 {offsets = [30, 0], sizes = [1, 128], strides = [1, 1]} : vector<32x128xi32> to vector<1x128xi32>
    %188 = vector.broadcast %186 : vector<8x1xi32> to vector<8x128xi32>
    %189 = vector.broadcast %187 : vector<1x128xi32> to vector<8x128xi32>
    %190 = arith.cmpi eq, %188, %189 : vector<8x128xi32>
    %191 = arith.andi %185, %190 : vector<8x128xi1>
    %192 = vector.extract_strided_slice %3 {offsets = [0, 31], sizes = [8, 1], strides = [1, 1]} : vector<8x32xi32> to vector<8x1xi32>
    %193 = vector.extract_strided_slice %6 {offsets = [31, 0], sizes = [1, 128], strides = [1, 1]} : vector<32x128xi32> to vector<1x128xi32>
    %194 = vector.broadcast %192 : vector<8x1xi32> to vector<8x128xi32>
    %195 = vector.broadcast %193 : vector<1x128xi32> to vector<8x128xi32>
    %196 = arith.cmpi eq, %194, %195 : vector<8x128xi32>
    %197 = arith.andi %191, %196 : vector<8x128xi1>
    %c0_i32_4 = arith.constant 0 : i32
    %198 = arith.addi %4, %c0_i32_4 : i32
    %199 = tpu.iota {dimensions = array<i32: 1>} : vector<8x128xi32>
    %200 = vector.broadcast %198 : i32 to vector<8x128xi32>
    %201 = arith.addi %200, %199 : vector<8x128xi32>
    %c6_i32 = arith.constant 6 : i32
    %202 = vector.broadcast %c6_i32 : i32 to vector<8x128xi32>
    %203 = arith.cmpi slt, %201, %202 : vector<8x128xi32>
    %204 = arith.andi %197, %203 : vector<8x128xi1>
    %c-1_i32_5 = arith.constant -1 : i32
    %205 = vector.broadcast %c-1_i32_5 : i32 to vector<8x128xi32>
    %206 = arith.select %204, %201, %205 : vector<8x128xi1>, vector<8x128xi32>
    %cst = arith.constant dense<-2147483648> : vector<8xi32>
    %207 = vector.multi_reduction <maxsi>, %206, %cst [1] : vector<8x128xi32> to vector<8xi32>
    %208 = vector.shape_cast %207 : vector<8xi32> to vector<8x1xi32>
    %209 = arith.maxsi %5, %208 : vector<8x1xi32>
    %c0_6 = arith.constant 0 : index
    %c0_7 = arith.constant 0 : index
    %210 = vector.load %arg4[%c0_6, %c0_7] : memref<8x128xi32, #tpu.memory_space<vmem>>, vector<8x128xi32>
    %211 = vector.broadcast %209 : vector<8x1xi32> to vector<8x128xi32>
    %212 = arith.maxsi %210, %211 : vector<8x128xi32>
    %c0_8 = arith.constant 0 : index
    %c0_9 = arith.constant 0 : index
    %213 = vector.load %arg4[%c0_8, %c0_9] : memref<8x128xi32, #tpu.memory_space<vmem>>, vector<8x128xi32>
    tpu.vector_store %arg4[%c0_8, %c0_9], %212 {strides = array<i32>} : memref<8x128xi32, #tpu.memory_space<vmem>>, vector<8x128xi32>,
    return
  }
  func.func @transform_0(%arg0: i32, %arg1: i32) -> (i32, i32) {
    %c0_i32 = arith.constant 0 : i32
    %c0_i32_0 = arith.constant 0 : i32
    return %arg0, %c0_i32 : i32, i32
  }
  func.func @transform_1(%arg0: i32, %arg1: i32) -> (i32, i32) {
    %c0_i32 = arith.constant 0 : i32
    %c0_i32_0 = arith.constant 0 : i32
    return %c0_i32, %arg1 : i32, i32
  }
  func.func @transform_2(%arg0: i32, %arg1: i32) -> (i32, i32) {
    %c0_i32 = arith.constant 0 : i32
    %c0_i32_0 = arith.constant 0 : i32
    return %arg0, %c0_i32 : i32, i32
  }
}

</mosaic_0001>

<llo_original>
// kernel: _lookup.1
$region0: #{_lookup.1}
  #allocation0 [shape = 'u32[]', space=smem, size = 0x4, offset = 0x4, fixed_abs, tag = 'smem constant byte address 0x4 - core index']
  #allocation1 [shape = 'u32[72,128]{1,0:T(1,128)}', space=vmem, size = 0x9000, scoped, tag = 'internal scratch']
  %s0 = inlined_call_operand.hbm [shape: s32[8,32], index: 0, kind: input, shape index: {}]
  %s1 = inlined_call_operand.hbm [shape: s32[32,128], index: 1, kind: input, shape index: {}]
  %s2 = inlined_call_operand.hbm [shape: s32[8,128], index: 2, kind: output, shape index: {}]
  %s3 = sld [smem:[#allocation0]]
  $region30: #{_lookup.1} parent=0
    _
  %s5 = ssub.s32 1, %s3
  %s6 = scalar_select 0, %s5, %s3
  $region1: #{_lookup.1} parent=0
    #allocation2 [shape = 'u8[4096]{0}', space=vmem, size = 0x1000, scoped, tag = 'input window, operand 0, single buffered']
    #allocation3 [shape = 's32[1]{0}', space=sflag, size = 0x4, scoped, tag = 'scoped memory for _lookup.1']
    #allocation4 [shape = 's32[1]{0}', space=sflag, size = 0x4, scoped, tag = 'scoped memory for _lookup.1']
    #allocation5 [shape = 'u8[16384]{0}', space=vmem, size = 0x4000, scoped, tag = 'input window, operand 1, single buffered']
    #allocation6 [shape = 's32[1]{0}', space=sflag, size = 0x4, scoped, tag = 'scoped memory for _lookup.1']
    #allocation7 [shape = 'u8[4096]{0}', space=vmem, size = 0x1000, scoped, tag = 'output window, operand 0, single buffered']
    %7 = vsyncpa [#allocation3], 0
    %8 = vsyncpa [#allocation6], 0
    %9 = vsyncpa [#allocation4], 0
    // Predicated region
    $region2: #{_lookup.1} parent=1 // pred_check
      _
    $region3: #{_lookup.1} parent=1 // pred_check_branch
      %11 = sbr.rel (0) target = $region5
    $region4: #{_lookup.1} parent=1 // pred_region
      %13 = vsyncadd [#allocation3], 0
      %s15 = sshll.u32 %s0, 4
      %s16 = int_to_ptr.hbm [resolvable:$true] %s15
      %s17 = sshll.u32 [#allocation2], 4
      %s18 = int_to_ptr.vmem [resolvable:$true] %s17
      %20 = dma.hbm_to_vmem [thread:$0]  %s16, 128, %s18, [#allocation3]
    $region5: #{_lookup.1} parent=1 // pred_fallthru
      _
    // Predicated region
    $region6: #{_lookup.1} parent=1 // pred_check
      _
    $region7: #{_lookup.1} parent=1 // pred_check_branch
      %22 = sbr.rel (0) target = $region9
    $region8: #{_lookup.1} parent=1 // pred_region
      %24 = vsyncadd [#allocation6], 0
      %s25 = sshll.u32 %s1, 4
      %s26 = int_to_ptr.hbm [resolvable:$true] %s25
      %s27 = sshll.u32 [#allocation5], 4
      %s28 = int_to_ptr.vmem [resolvable:$true] %s27
      %33 = dma.hbm_to_vmem [thread:$0]  %s26, 512, %s28, [#allocation6], 128, 128, 8
    $region9: #{_lookup.1} parent=1 // pred_fallthru
      _
    // Predicated region
    $region10: #{_lookup.1} parent=1 // pred_check
      _
    $region11: #{_lookup.1} parent=1 // pred_check_branch
      %35 = sbr.rel (0) target = $region13
    $region12: #{_lookup.1} parent=1 // pred_region
      %37 = dma.done [#allocation3], 128
    $region13: #{_lookup.1} parent=1 // pred_fallthru
      _
    // Predicated region
    $region14: #{_lookup.1} parent=1 // pred_check
      _
    $region15: #{_lookup.1} parent=1 // pred_check_branch
      %39 = sbr.rel (0) target = $region17
    $region16: #{_lookup.1} parent=1 // pred_region
      %41 = dma.done [#allocation6], 512
    $region17: #{_lookup.1} parent=1 // pred_fallthru
      _
    %p42 = scmp.eq.s32.totalorder 0, 0
    // Predicated region
    $region18: #{_lookup.1} parent=1 // pred_check
      %p43 = pneg %p42
    $region19: #{_lookup.1} parent=1 // pred_check_branch
      %45 = sbr.rel (%p43) target = $region21
    $region20: #{_lookup.1} parent=1 // pred_region
      %46 = vst [vmem:[#allocation7] sm:$0xff] 4294967295
    $region21: #{_lookup.1} parent=1 // pred_fallthru
      _
    %v47 = vld [vmem:[#allocation2] sm:$0xff]
    %s48 = smul.u32 0, 128
    %v49 = vld [vmem:[#allocation5] sm:$0xff]
    %v50 = vld [vmem:[#allocation5 + $0x8] sm:$0xff]
    %v51 = vld [vmem:[#allocation5 + $0x10] sm:$0xff]
    %v52 = vld [vmem:[#allocation5 + $0x18] sm:$0xff]
    %53 = vset.pattern.permute.xlu0 0
    %54 = vperm.xlu0 %53, %v47
    %v55 = vpop.permute.xlu0 %54
    %v56 = vperm.slane %v49, 0
    %vm57 = vcmp.eq.s32.totalorder %v55, %v56
    %58 = vset.pattern.permute.xlu0 1
    %59 = vperm.xlu0 %58, %v47
    %v60 = vpop.permute.xlu0 %59
    %v61 = vperm.slane %v49, 1
    %vm62 = vcmp.eq.s32.totalorder %v60, %v61
    %vm63 = vmand %vm57, %vm62
    %64 = vset.pattern.permute.xlu0 2
    %65 = vperm.xlu0 %64, %v47
    %v66 = vpop.permute.xlu0 %65
    %v67 = vperm.slane %v49, 2
    %vm68 = vcmp.eq.s32.totalorder %v66, %v67
    %vm69 = vmand %vm63, %vm68
    %70 = vset.pattern.permute.xlu0 3
    %71 = vperm.xlu0 %70, %v47
    %v72 = vpop.permute.xlu0 %71
    %v73 = vperm.slane %v49, 3
    %vm74 = vcmp.eq.s32.totalorder %v72, %v73
    %vm75 = vmand %vm69, %vm74
    %76 = vset.pattern.permute.xlu0 4
    %77 = vperm.xlu0 %76, %v47
    %v78 = vpop.permute.xlu0 %77
    %v79 = vperm.slane %v49, 4
    %vm80 = vcmp.eq.s32.totalorder %v78, %v79
    %vm81 = vmand %vm75, %vm80
    %82 = vset.pattern.permute.xlu0 5
    %83 = vperm.xlu0 %82, %v47
    %v84 = vpop.permute.xlu0 %83
    %v85 = vperm.slane %v49, 5
    %vm86 = vcmp.eq.s32.totalorder %v84, %v85
    %vm87 = vmand %vm81, %vm86
    %88 = vset.pattern.permute.xlu0 6
    %89 = vperm.xlu0 %88, %v47
    %v90 = vpop.permute.xlu0 %89
    %v91 = vperm.slane %v49, 6
    %vm92 = vcmp.eq.s32.totalorder %v90, %v91
    %vm93 = vmand %vm87, %vm92
    %94 = vset.pattern.permute.xlu0 7
    %95 = vperm.xlu0 %94, %v47
    %v96 = vpop.permute.xlu0 %95
    %v97 = vperm.slane %v49, 7
    %vm98 = vcmp.eq.s32.totalorder %v96, %v97
    %vm99 = vmand %vm93, %vm98
    %100 = vset.pattern.permute.xlu0 8
    %101 = vperm.xlu0 %100, %v47
    %v102 = vpop.permute.xlu0 %101
    %v103 = vperm.slane %v50, 0
    %vm104 = vcmp.eq.s32.totalorder %v102, %v103
    %vm105 = vmand %vm99, %vm104
    %106 = vset.pattern.permute.xlu0 9
    %107 = vperm.xlu0 %106, %v47
    %v108 = vpop.permute.xlu0 %107
    %v109 = vperm.slane %v50, 1
    %vm110 = vcmp.eq.s32.totalorder %v108, %v109
    %vm111 = vmand %vm105, %vm110
    %112 = vset.pattern.permute.xlu0 10
    %113 = vperm.xlu0 %112, %v47
    %v114 = vpop.permute.xlu0 %113
    %v115 = vperm.slane %v50, 2
    %vm116 = vcmp.eq.s32.totalorder %v114, %v115
    %vm117 = vmand %vm111, %vm116
    %118 = vset.pattern.permute.xlu0 11
    %119 = vperm.xlu0 %118, %v47
    %v120 = vpop.permute.xlu0 %119
    %v121 = vperm.slane %v50, 3
    %vm122 = vcmp.eq.s32.totalorder %v120, %v121
    %vm123 = vmand %vm117, %vm122
    %124 = vset.pattern.permute.xlu0 12
    %125 = vperm.xlu0 %124, %v47
    %v126 = vpop.permute.xlu0 %125
    %v127 = vperm.slane %v50, 4
    %vm128 = vcmp.eq.s32.totalorder %v126, %v127
    %vm129 = vmand %vm123, %vm128
    %130 = vset.pattern.permute.xlu0 13
    %131 = vperm.xlu0 %130, %v47
    %v132 = vpop.permute.xlu0 %131
    %v133 = vperm.slane %v50, 5
    %vm134 = vcmp.eq.s32.totalorder %v132, %v133
    %vm135 = vmand %vm129, %vm134
    %136 = vset.pattern.permute.xlu0 14
    %137 = vperm.xlu0 %136, %v47
    %v138 = vpop.permute.xlu0 %137
    %v139 = vperm.slane %v50, 6
    %vm140 = vcmp.eq.s32.totalorder %v138, %v139
    %vm141 = vmand %vm135, %vm140
    %142 = vset.pattern.permute.xlu0 15
    %143 = vperm.xlu0 %142, %v47
    %v144 = vpop.permute.xlu0 %143
    %v145 = vperm.slane %v50, 7
    %vm146 = vcmp.eq.s32.totalorder %v144, %v145
    %vm147 = vmand %vm141, %vm146
    %148 = vset.pattern.permute.xlu0 16
    %149 = vperm.xlu0 %148, %v47
    %v150 = vpop.permute.xlu0 %149
    %v151 = vperm.slane %v51, 0
    %vm152 = vcmp.eq.s32.totalorder %v150, %v151
    %vm153 = vmand %vm147, %vm152
    %154 = vset.pattern.permute.xlu0 17
    %155 = vperm.xlu0 %154, %v47
    %v156 = vpop.permute.xlu0 %155
    %v157 = vperm.slane %v51, 1
    %vm158 = vcmp.eq.s32.totalorder %v156, %v157
    %vm159 = vmand %vm153, %vm158
    %160 = vset.pattern.permute.xlu0 18
    %161 = vperm.xlu0 %160, %v47
    %v162 = vpop.permute.xlu0 %161
    %v163 = vperm.slane %v51, 2
    %vm164 = vcmp.eq.s32.totalorder %v162, %v163
    %vm165 = vmand %vm159, %vm164
    %166 = vset.pattern.permute.xlu0 19
    %167 = vperm.xlu0 %166, %v47
    %v168 = vpop.permute.xlu0 %167
    %v169 = vperm.slane %v51, 3
    %vm170 = vcmp.eq.s32.totalorder %v168, %v169
    %vm171 = vmand %vm165, %vm170
    %172 = vset.pattern.permute.xlu0 20
    %173 = vperm.xlu0 %172, %v47
    %v174 = vpop.permute.xlu0 %173
    %v175 = vperm.slane %v51, 4
    %vm176 = vcmp.eq.s32.totalorder %v174, %v175
    %vm177 = vmand %vm171, %vm176
    %178 = vset.pattern.permute.xlu0 21
    %179 = vperm.xlu0 %178, %v47
    %v180 = vpop.permute.xlu0 %179
    %v181 = vperm.slane %v51, 5
    %vm182 = vcmp.eq.s32.totalorder %v180, %v181
    %vm183 = vmand %vm177, %vm182
    %184 = vset.pattern.permute.xlu0 22
    %185 = vperm.xlu0 %184, %v47
    %v186 = vpop.permute.xlu0 %185
    %v187 = vperm.slane %v51, 6
    %vm188 = vcmp.eq.s32.totalorder %v186, %v187
    %vm189 = vmand %vm183, %vm188
    %190 = vset.pattern.permute.xlu0 23
    %191 = vperm.xlu0 %190, %v47
    %v192 = vpop.permute.xlu0 %191
    %v193 = vperm.slane %v51, 7
    %vm194 = vcmp.eq.s32.totalorder %v192, %v193
    %vm195 = vmand %vm189, %vm194
    %196 = vset.pattern.permute.xlu0 24
    %197 = vperm.xlu0 %196, %v47
    %v198 = vpop.permute.xlu0 %197
    %v199 = vperm.slane %v52, 0
    %vm200 = vcmp.eq.s32.totalorder %v198, %v199
    %vm201 = vmand %vm195, %vm200
    %202 = vset.pattern.permute.xlu0 25
    %203 = vperm.xlu0 %202, %v47
    %v204 = vpop.permute.xlu0 %203
    %v205 = vperm.slane %v52, 1
    %vm206 = vcmp.eq.s32.totalorder %v204, %v205
    %vm207 = vmand %vm201, %vm206
    %208 = vset.pattern.permute.xlu0 26
    %209 = vperm.xlu0 %208, %v47
    %v210 = vpop.permute.xlu0 %209
    %v211 = vperm.slane %v52, 2
    %vm212 = vcmp.eq.s32.totalorder %v210, %v211
    %vm213 = vmand %vm207, %vm212
    %214 = vset.pattern.permute.xlu0 27
    %215 = vperm.xlu0 %214, %v47
    %v216 = vpop.permute.xlu0 %215
    %v217 = vperm.slane %v52, 3
    %vm218 = vcmp.eq.s32.totalorder %v216, %v217
    %vm219 = vmand %vm213, %vm218
    %220 = vset.pattern.permute.xlu0 28
    %221 = vperm.xlu0 %220, %v47
    %v222 = vpop.permute.xlu0 %221
    %v223 = vperm.slane %v52, 4
    %vm224 = vcmp.eq.s32.totalorder %v222, %v223
    %vm225 = vmand %vm219, %vm224
    %226 = vset.pattern.permute.xlu0 29
    %227 = vperm.xlu0 %226, %v47
    %v228 = vpop.permute.xlu0 %227
    %v229 = vperm.slane %v52, 5
    %vm230 = vcmp.eq.s32.totalorder %v228, %v229
    %vm231 = vmand %vm225, %vm230
    %232 = vset.pattern.permute.xlu0 30
    %233 = vperm.xlu0 %232, %v47
    %v234 = vpop.permute.xlu0 %233
    %v235 = vperm.slane %v52, 6
    %vm236 = vcmp.eq.s32.totalorder %v234, %v235
    %vm237 = vmand %vm231, %vm236
    %238 = vset.pattern.permute.xlu0 31
    %239 = vperm.xlu0 %238, %v47
    %v240 = vpop.permute.xlu0 %239
    %v241 = vperm.slane %v52, 7
    %vm242 = vcmp.eq.s32.totalorder %v240, %v241
    %vm243 = vmand %vm237, %vm242
    %v244 = vlaneseq
    %v245 = vand.u32 %v244, 127
    %v246 = vstv %s48
    %v247 = vadd.s32 %v246, %v245
    %vm248 = vcmp.lt.s32.totalorder %v247, 6
    %vm249 = vmand %vm243, %vm248
    %v250 = vsel %vm249, %v247, 4294967295
    %v251 = vand.u32 %v250, 65535
    %v252 = vshra.s32 %v250, 16
    %v253 = vcvt.s32.f32 %v251
    %v254 = vcvt.s32.f32 %v252
    %255 = vmax.xlane.f32.xlu0 %v254
    %v256 = vpop.xlane.xlu0 %255
    %vm257 = vcmp.eq.f32.partialorder %v254, %v256
    %v258 = vsel %vm257, %v253, -inf
    %259 = vmax.xlane.f32.xlu0 %v258
    %v260 = vpop.xlane.xlu0 %259
    %v261 = vcvt.f32.s32 %v260
    %v262 = vcvt.f32.s32 %v256
    %v263 = vshll.u32 %v262, 16
    %v264 = vadd.s32 %v263, %v261
    %vm265 = vcmp.gt.s32.totalorder %v264, 4294967295
    %v266 = vsel %vm265, %v264, 4294967295
    %v267 = vld [vmem:[#allocation7] sm:$0xff]
    %vm268 = vcmp.gt.s32.totalorder %v267, %v266
    %v269 = vsel %vm268, %v267, %v266
    %270 = vst [vmem:[#allocation7] sm:$0xff] %v269
    // Predicated region
    $region22: #{_lookup.1} parent=1 // pred_check
      _
    $region23: #{_lookup.1} parent=1 // pred_check_branch
      %272 = sbr.rel (0) target = $region25
    $region24: #{_lookup.1} parent=1 // pred_region
      %274 = vsyncadd [#allocation4], 0
      %s276 = sshll.u32 [#allocation7], 4
      %s277 = int_to_ptr.vmem [resolvable:$true] %s276
      %s278 = sshll.u32 %s2, 4
      %s279 = int_to_ptr.hbm [resolvable:$true] %s278
      %281 = dma.vmem_to_hbm [thread:$0]  %s277, 128, %s279, [#allocation4]
    $region25: #{_lookup.1} parent=1 // pred_fallthru
      _
    // Predicated region
    $region26: #{_lookup.1} parent=1 // pred_check
      _
    $region27: #{_lookup.1} parent=1 // pred_check_branch
      %283 = sbr.rel (0) target = $region29
    $region28: #{_lookup.1} parent=1 // pred_region
      %285 = dma.done [#allocation4], 128
    $region29: #{_lookup.1} parent=1 // pred_fallthru
      _
    %286 = vsyncpa [#allocation3], 1
    %287 = vsyncpa [#allocation6], 1
    %288 = vsyncpa [#allocation4], 1

</llo_original>
